<compile_context>
chip_gen: v5e
topology: v5e:2x2
jax: 0.10.0
libtpu: 0.0.40
codegen_flags: <defaults>
</compile_context>

<pallas_src>
import functools

import jax
import jax.numpy as jnp
from jax.experimental import pallas as pl
from jax.experimental.pallas import tpu as pltpu


def _round_up(x, m):
    return ((x + m - 1) // m) * m


def _device_kind():
    try:
        return jax.devices()[0].device_kind.lower()
    except Exception:
        return ""


def _batch_tile_cap():
    kind = _device_kind()
    # v6e / v7x have a 256-wide MXU -> 256-row batch tiles pay off; v5e (128-wide MXU)
    # and unknown chips stay at 128.
    if "v6" in kind or "v7" in kind or "7x" in kind:
        return 256
    return 128


def _vmem_capacity_bytes():
    kind = _device_kind()
    if "v7" in kind or "7x" in kind:
        return 64 * 1024 * 1024    # v7x: 64 MiB per TensorCore
    return 128 * 1024 * 1024       # v5e / v6e


def _pad2(a, rows, cols):
    pr = rows - a.shape[0]
    pc = cols - a.shape[1]
    if pr == 0 and pc == 0:
        return a
    return jnp.pad(a, ((0, pr), (0, pc)))


def meta_learner_kernel(x_ref, w1_ref, b1_ref, w2_ref, b2_ref, o_ref, *, out_dim, out_pad):
    # dense1: (Bt, IN_PAD)bf16 @ (IN_PAD, H_PAD)bf16 -> f32 accumulate, + f32 bias.
    h = jnp.dot(x_ref[...], w1_ref[...], preferred_element_type=jnp.float32)
    h = jnp.maximum(h + b1_ref[...], 0.0)                       # ReLU in f32 (VPU)
    # dense2: (Bt, H_PAD)bf16 @ (H_PAD, OUT_PAD)bf16 -> f32 accumulate, + f32 bias.
    logits = jnp.dot(h.astype(jnp.bfloat16), w2_ref[...],
                     preferred_element_type=jnp.float32)
    logits = logits + b2_ref[...]
    # log_softmax over the real out_dim lanes; padded lanes masked to -inf so they do
    # not affect the max and contribute exp(-inf)=0 to the sum.
    if out_pad != out_dim:
        lane = jax.lax.broadcasted_iota(jnp.int32, logits.shape, 1)
        logits = jnp.where(lane < out_dim, logits, -jnp.inf)
    m = jnp.max(logits, axis=1, keepdims=True)
    shifted = logits - m
    lse = jnp.log(jnp.sum(jnp.exp(shifted), axis=1, keepdims=True))
    result = shifted - lse
    if out_pad != out_dim:
        # Store 0.0 (finite) in padded lanes so any downstream reuse of the padded
        # buffer never sees -inf.
        result = jnp.where(lane < out_dim, result, 0.0)
    o_ref[...] = result.astype(o_ref.dtype)


def make_meta_learner(w1, b1, w2, b2):
    """Pad + bf16-cast the weights ONCE and return a jitted forward closure."""
    in_dim, hidden = w1.shape
    out_dim = w2.shape[1]

    in_pad = _round_up(in_dim, 128)
    h_pad = _round_up(hidden, 128)
    out_pad = _round_up(out_dim, 128)

    # One-time weight preparation: cast to bf16 first, then a single pad (half the bytes
    # of pad-in-f32-then-cast); biases stay f32.
    w1_p = _pad2(w1.astype(jnp.bfloat16), in_pad, h_pad)
    w2_p = _pad2(w2.astype(jnp.bfloat16), h_pad, out_pad)
    b1_p = _pad2(b1.astype(jnp.float32), 1, h_pad)
    b2_p = _pad2(b2.astype(jnp.float32), 1, out_pad)

    # ---- VMEM budget: weights single-buffered (Buffered(1)); x/out double-buffered.
    weight_bytes = 2 * (in_pad * h_pad + h_pad * out_pad)        # bf16
    bias_bytes = 4 * (h_pad + out_pad)

    def io_bytes(bt):
        # 2x bf16 x-tile (double buffer) + 2x f32 out-tile + live f32 intermediate h.
        return 2 * bt * in_pad * 2 + 2 * bt * out_pad * 4 + bt * h_pad * 4

    tile_cap = _batch_tile_cap()
    vmem_cap = _vmem_capacity_bytes()
    while tile_cap > 128 and weight_bytes + bias_bytes + io_bytes(tile_cap) > int(0.6 * vmem_cap):
        tile_cap //= 2
    # TODO(synk): if the resident weight set itself outgrows v7x's 64 MiB VMEM, add a K
    # ("arbitrary") grid axis over in_pad with an f32 VMEM accumulator instead of
    # shrinking the batch tile.
    vmem_limit = int(min(vmem_cap,
                         max(32 * 1024 * 1024,
                             2 * (weight_bytes + bias_bytes + io_bytes(tile_cap)))))

    def forward_impl(data):
        B = data.shape[0]
        # torch.flatten(data, start_dim=1); activations go to bf16 before padding.
        x = data.reshape(B, -1).astype(jnp.bfloat16)

        # Batch tile: multiple of 16 (bf16 (16,128) vreg tile); single grid step for
        # small batches, capped per chip generation for large ones.
        b_tile = min(tile_cap, _round_up(B, 16))
        b_pad = _round_up(B, b_tile)
        x = _pad2(x, b_pad, in_pad)                  # no-op when already aligned
        grid = (b_pad // b_tile,)

        kernel = functools.partial(meta_learner_kernel, out_dim=out_dim, out_pad=out_pad)
        cost = pl.CostEstimate(
            flops=2 * b_pad * in_pad * h_pad + 2 * b_pad * h_pad * out_pad,
            transcendentals=b_pad * out_pad + b_pad,
            bytes_accessed=(b_pad * in_pad * 2 + weight_bytes + bias_bytes
                            + b_pad * out_pad * 4),
        )

        out_padded = pl.pallas_call(
            kernel,
            out_shape=jax.ShapeDtypeStruct((b_pad, out_pad), jnp.float32),
            grid=grid,
            in_specs=[
                # Batch-tiled activations: pipelined (default double buffering).
                pl.BlockSpec((b_tile, in_pad), lambda i: (i, 0)),
                # Constant weights/biases: resident across the whole grid -> one buffer.
                pl.BlockSpec((in_pad, h_pad), lambda i: (0, 0),
                             pipeline_mode=pl.Buffered(buffer_count=1)),
                pl.BlockSpec((1, h_pad), lambda i: (0, 0),
                             pipeline_mode=pl.Buffered(buffer_count=1)),
                pl.BlockSpec((h_pad, out_pad), lambda i: (0, 0),
                             pipeline_mode=pl.Buffered(buffer_count=1)),
                pl.BlockSpec((1, out_pad), lambda i: (0, 0),
                             pipeline_mode=pl.Buffered(buffer_count=1)),
            ],
            out_specs=pl.BlockSpec((b_tile, out_pad), lambda i: (i, 0)),
            compiler_params=pltpu.CompilerParams(
                # Batch axis is embarrassingly parallel (shards across TensorCores on
                # multi-TC chips).
                dimension_semantics=("parallel",),
                vmem_limit_bytes=vmem_limit,
            ),
            cost_estimate=cost,
        )(x, w1_p, b1_p, w2_p, b2_p)

        # Slice back to the logical shape.
        return out_padded[:B, :out_dim]

    return jax.jit(forward_impl)


def init_params(key, n_best, num_base_models, feat_dim):
    """Deterministic synthetic parameters matching nn.Linear (stored transposed: (in, out))."""
    in_dim = num_base_models * n_best * feat_dim
    hidden = int(num_base_models * n_best * feat_dim / 2.0)
    out_dim = num_base_models * n_best

    k1, k2, k3, k4 = jax.random.split(key, 4)
    # PyTorch nn.Linear default init: U(-1/sqrt(fan_in), 1/sqrt(fan_in))
    lim1 = 1.0 / jnp.sqrt(in_dim)
    lim2 = 1.0 / jnp.sqrt(hidden)
    w1 = jax.random.uniform(k1, (in_dim, hidden), jnp.float32, -lim1, lim1)
    b1 = jax.random.uniform(k2, (1, hidden), jnp.float32, -lim1, lim1)
    w2 = jax.random.uniform(k3, (hidden, out_dim), jnp.float32, -lim2, lim2)
    b2 = jax.random.uniform(k4, (1, out_dim), jnp.float32, -lim2, lim2)
    return w1, b1, w2, b2


def reference_forward_f32(data, w1, b1, w2, b2):
    """Plain-JAX f32 reference (matches the PyTorch module semantics)."""
    x = data.reshape(data.shape[0], -1)
    h = jnp.maximum(x @ w1 + b1, 0.0)
    logits = h @ w2 + b2
    return jax.nn.log_softmax(logits, axis=1)


def reference_forward_bf16(data, w1, b1, w2, b2):
    """Reference matching the kernel's bf16-input / f32-accumulate compute path."""
    x = data.reshape(data.shape[0], -1).astype(jnp.bfloat16)
    h = jnp.dot(x, w1.astype(jnp.bfloat16), preferred_element_type=jnp.float32) + b1
    h = jnp.maximum(h, 0.0)
    logits = jnp.dot(h.astype(jnp.bfloat16), w2.astype(jnp.bfloat16),
                     preferred_element_type=jnp.float32) + b2
    return jax.nn.log_softmax(logits, axis=1)


if __name__ == "__main__":
    # Small shapes: num_base_models=2, n_best=4, feat_dim=8 -> in_dim=64, hidden=32, out=8
    n_best, num_base_models, feat_dim = 4, 2, 8
    batch = 2

    key = jax.random.PRNGKey(0)
    kd, kp = jax.random.split(key)
    data = jax.random.normal(kd, (batch, num_base_models, n_best, feat_dim), jnp.float32)
    w1, b1, w2, b2 = init_params(kp, n_best, num_base_models, feat_dim)

    forward = make_meta_learner(w1, b1, w2, b2)   # weights padded + cast exactly once
    out = forward(data)
    out = jax.block_until_ready(out)
    assert out.shape == (batch, num_base_models * n_best)

    # Tight check against a reference using the same bf16-matmul / f32-accumulate path.
    ref_bf16 = reference_forward_bf16(data, w1, b1, w2, b2)
    assert jnp.allclose(out, ref_bf16, atol=1e-4, rtol=1e-4), (
        f"max abs diff vs bf16 ref: {jnp.max(jnp.abs(out - ref_bf16))}")

    # Loose check against the full-f32 PyTorch-equivalent semantics.
    ref_f32 = reference_forward_f32(data, w1, b1, w2, b2)
    assert jnp.allclose(out, ref_f32, atol=5e-2, rtol=5e-2), (
        f"max abs diff vs f32 ref: {jnp.max(jnp.abs(out - ref_f32))}")

    print("KERNEL_OK")
</pallas_src>

<mosaic_0001>
module attributes {stable_mosaic.version = 11 : i64} {
  func.func @meta_learner_kernel(%arg0: i32, %arg1: memref<16x128xbf16, #tpu.memory_space<vmem>>, %arg2: memref<128x128xbf16, #tpu.memory_space<vmem>>, %arg3: memref<1x128xf32, #tpu.memory_space<vmem>>, %arg4: memref<128x128xbf16, #tpu.memory_space<vmem>>, %arg5: memref<1x128xf32, #tpu.memory_space<vmem>>, %arg6: memref<16x128xf32, #tpu.memory_space<vmem>>) attributes {dimension_semantics = [#tpu.dimension_semantics<parallel>], iteration_bounds = array<i64: 1>, scalar_prefetch = 0 : i64, scratch_operands = 0 : i64, tpu.core_type = #tpu.core_type<tc>, window_params = [{transform_indices = @transform_0, window_bounds = array<i64: 16, 128>}, {pipeline_mode = #tpu.pipeline_mode<synchronous>, transform_indices = @transform_1, window_bounds = array<i64: 128, 128>}, {pipeline_mode = #tpu.pipeline_mode<synchronous>, transform_indices = @transform_2, window_bounds = array<i64: 1, 128>}, {pipeline_mode = #tpu.pipeline_mode<synchronous>, transform_indices = @transform_3, window_bounds = array<i64: 128, 128>}, {pipeline_mode = #tpu.pipeline_mode<synchronous>, transform_indices = @transform_4, window_bounds = array<i64: 1, 128>}, {transform_indices = @transform_5, window_bounds = array<i64: 16, 128>}]} {
    %c0 = arith.constant 0 : index
    %c0_0 = arith.constant 0 : index
    %0 = vector.load %arg1[%c0, %c0_0] : memref<16x128xbf16, #tpu.memory_space<vmem>>, vector<16x128xbf16>
    %c0_1 = arith.constant 0 : index
    %c0_2 = arith.constant 0 : index
    %1 = vector.load %arg2[%c0_1, %c0_2] : memref<128x128xbf16, #tpu.memory_space<vmem>>, vector<128x128xbf16>
    %cst = arith.constant dense<0.000000e+00> : vector<16x128xf32>
    %2 = tpu.matmul %0, %1, %cst {dimension_numbers = #tpu.dot_dimension_numbers<[1], [0], [0], [1], [0, 0, 1, 1], [], []>} : vector<16x128xbf16>, vector<128x128xbf16>, vector<16x128xf32> -> vector<16x128xf32>
    %c0_3 = arith.constant 0 : index
    %c0_4 = arith.constant 0 : index
    %3 = vector.load %arg3[%c0_3, %c0_4] : memref<1x128xf32, #tpu.memory_space<vmem>>, vector<1x128xf32>
    %4 = vector.broadcast %3 : vector<1x128xf32> to vector<16x128xf32>
    %5 = arith.addf %2, %4 : vector<16x128xf32>
    %cst_5 = arith.constant 0.000000e+00 : f32
    %6 = vector.broadcast %cst_5 : f32 to vector<16x128xf32>
    %7 = arith.maximumf %5, %6 : vector<16x128xf32>
    %8 = arith.truncf %7 : vector<16x128xf32> to vector<16x128xbf16>
    %c0_6 = arith.constant 0 : index
    %c0_7 = arith.constant 0 : index
    %9 = vector.load %arg4[%c0_6, %c0_7] : memref<128x128xbf16, #tpu.memory_space<vmem>>, vector<128x128xbf16>
    %cst_8 = arith.constant dense<0.000000e+00> : vector<16x128xf32>
    %10 = tpu.matmul %8, %9, %cst_8 {dimension_numbers = #tpu.dot_dimension_numbers<[1], [0], [0], [1], [0, 0, 1, 1], [], []>} : vector<16x128xbf16>, vector<128x128xbf16>, vector<16x128xf32> -> vector<16x128xf32>
    %c0_9 = arith.constant 0 : index
    %c0_10 = arith.constant 0 : index
    %11 = vector.load %arg5[%c0_9, %c0_10] : memref<1x128xf32, #tpu.memory_space<vmem>>, vector<1x128xf32>
    %12 = vector.broadcast %11 : vector<1x128xf32> to vector<16x128xf32>
    %13 = arith.addf %10, %12 : vector<16x128xf32>
    %14 = tpu.iota {dimensions = array<i32: 1>} : vector<16x128xi32>
    %c8_i32 = arith.constant 8 : i32
    %15 = vector.broadcast %c8_i32 : i32 to vector<16x128xi32>
    %16 = arith.cmpi slt, %14, %15 : vector<16x128xi32>
    %cst_11 = arith.constant 0xFF800000 : f32
    %17 = vector.broadcast %cst_11 : f32 to vector<16x128xf32>
    %18 = arith.select %16, %13, %17 : vector<16x128xi1>, vector<16x128xf32>
    %cst_12 = arith.constant dense<0xFF800000> : vector<16xf32>
    %19 = vector.multi_reduction <maximumf>, %18, %cst_12 [1] : vector<16x128xf32> to vector<16xf32>
    %20 = vector.shape_cast %19 : vector<16xf32> to vector<16x1xf32>
    %21 = vector.broadcast %20 : vector<16x1xf32> to vector<16x128xf32>
    %22 = arith.subf %18, %21 : vector<16x128xf32>
    %23 = math.exp %22 : vector<16x128xf32>
    %cst_13 = arith.constant dense<0.000000e+00> : vector<16xf32>
    %24 = vector.multi_reduction <add>, %23, %cst_13 [1] : vector<16x128xf32> to vector<16xf32>
    %25 = vector.shape_cast %24 : vector<16xf32> to vector<16x1xf32>
    %26 = math.log %25 : vector<16x1xf32>
    %27 = vector.broadcast %26 : vector<16x1xf32> to vector<16x128xf32>
    %28 = arith.subf %22, %27 : vector<16x128xf32>
    %c8_i32_14 = arith.constant 8 : i32
    %29 = vector.broadcast %c8_i32_14 : i32 to vector<16x128xi32>
    %30 = arith.cmpi slt, %14, %29 : vector<16x128xi32>
    %cst_15 = arith.constant 0.000000e+00 : f32
    %31 = vector.broadcast %cst_15 : f32 to vector<16x128xf32>
    %32 = arith.select %30, %28, %31 : vector<16x128xi1>, vector<16x128xf32>
    %c0_16 = arith.constant 0 : index
    %c0_17 = arith.constant 0 : index
    %33 = vector.load %arg6[%c0_16, %c0_17] : memref<16x128xf32, #tpu.memory_space<vmem>>, vector<16x128xf32>
    tpu.vector_store %arg6[%c0_16, %c0_17], %32 {strides = array<i32>} : memref<16x128xf32, #tpu.memory_space<vmem>>, vector<16x128xf32>,
    return
  }
  func.func @transform_0(%arg0: i32) -> (i32, i32) {
    %c0_i32 = arith.constant 0 : i32
    %c0_i32_0 = arith.constant 0 : i32
    return %arg0, %c0_i32 : i32, i32
  }
  func.func @transform_1(%arg0: i32) -> (i32, i32) {
    %c0_i32 = arith.constant 0 : i32
    %c0_i32_0 = arith.constant 0 : i32
    %c0_i32_1 = arith.constant 0 : i32
    return %c0_i32, %c0_i32_0 : i32, i32
  }
  func.func @transform_2(%arg0: i32) -> (i32, i32) {
    %c0_i32 = arith.constant 0 : i32
    %c0_i32_0 = arith.constant 0 : i32
    %c0_i32_1 = arith.constant 0 : i32
    return %c0_i32, %c0_i32_0 : i32, i32
  }
  func.func @transform_3(%arg0: i32) -> (i32, i32) {
    %c0_i32 = arith.constant 0 : i32
    %c0_i32_0 = arith.constant 0 : i32
    %c0_i32_1 = arith.constant 0 : i32
    return %c0_i32, %c0_i32_0 : i32, i32
  }
  func.func @transform_4(%arg0: i32) -> (i32, i32) {
    %c0_i32 = arith.constant 0 : i32
    %c0_i32_0 = arith.constant 0 : i32
    %c0_i32_1 = arith.constant 0 : i32
    return %c0_i32, %c0_i32_0 : i32, i32
  }
  func.func @transform_5(%arg0: i32) -> (i32, i32) {
    %c0_i32 = arith.constant 0 : i32
    %c0_i32_0 = arith.constant 0 : i32
    return %arg0, %c0_i32 : i32, i32
  }
}

</mosaic_0001>

<llo_original>
// kernel: forward_impl.1
$region0: #{forward_impl.1}
  #allocation0 [shape = 'u32[]', space=smem, size = 0x4, offset = 0x4, fixed_abs, tag = 'smem constant byte address 0x4 - core index']
  #allocation1 [shape = 'u32[72,128]{1,0:T(1,128)}', space=vmem, size = 0x9000, scoped, tag = 'internal scratch']
  %s0 = inlined_call_operand.vmem [shape: bf16[16,128], index: 0, kind: input, shape index: {}]
  %s1 = inlined_call_operand.hbm [shape: bf16[128,128], index: 1, kind: input, shape index: {}]
  %s2 = inlined_call_operand.vmem [shape: f32[1,128], index: 2, kind: input, shape index: {}]
  %s3 = inlined_call_operand.hbm [shape: bf16[128,128], index: 3, kind: input, shape index: {}]
  %s4 = inlined_call_operand.vmem [shape: f32[1,128], index: 4, kind: input, shape index: {}]
  %s5 = inlined_call_operand.vmem [shape: f32[16,128], index: 5, kind: output, shape index: {}]
  %s6 = sld [smem:[#allocation0]]
  $region38: #{forward_impl.1} parent=0
    _
  %s8 = ssub.s32 1, %s6
  %s9 = scalar_select 0, %s8, %s6
  $region1: #{forward_impl.1} parent=0
    #allocation2 [shape = 'u8[32768]{0}', space=vmem, size = 0x8000, scoped, tag = 'input window, operand 1, single buffered']
    #allocation3 [shape = 's32[1]{0}', space=sflag, size = 0x4, scoped, tag = 'scoped memory for forward_impl.1']
    #allocation4 [shape = 'u8[32768]{0}', space=vmem, size = 0x8000, scoped, tag = 'input window, operand 3, single buffered']
    #allocation5 [shape = 's32[1]{0}', space=sflag, size = 0x4, scoped, tag = 'scoped memory for forward_impl.1']
    %10 = vsyncpa [#allocation3], 0
    %11 = vsyncpa [#allocation5], 0
    // Predicated region
    $region2: #{forward_impl.1} parent=1 // pred_check
      _
    $region3: #{forward_impl.1} parent=1 // pred_check_branch
      %13 = sbr.rel (0) target = $region5
    $region4: #{forward_impl.1} parent=1 // pred_region
      _
    $region5: #{forward_impl.1} parent=1 // pred_fallthru
      _
    // Predicated region
    $region6: #{forward_impl.1} parent=1 // pred_check
      _
    $region7: #{forward_impl.1} parent=1 // pred_check_branch
      %15 = sbr.rel (0) target = $region9
    $region8: #{forward_impl.1} parent=1 // pred_region
      %17 = vsyncadd [#allocation3], 0
      %s18 = sshll.u32 %s1, 4
      %s19 = int_to_ptr.hbm [resolvable:$true] %s18
      %s20 = sshll.u32 [#allocation2], 4
      %s21 = int_to_ptr.vmem [resolvable:$true] %s20
      %26 = dma.hbm_to_vmem [thread:$0]  %s19, 1024, %s21, [#allocation3], 64, 64, 4
    $region9: #{forward_impl.1} parent=1 // pred_fallthru
      _
    // Predicated region
    $region10: #{forward_impl.1} parent=1 // pred_check
      _
    $region11: #{forward_impl.1} parent=1 // pred_check_branch
      %28 = sbr.rel (0) target = $region13
    $region12: #{forward_impl.1} parent=1 // pred_region
      _
    $region13: #{forward_impl.1} parent=1 // pred_fallthru
      _
    // Predicated region
    $region14: #{forward_impl.1} parent=1 // pred_check
      _
    $region15: #{forward_impl.1} parent=1 // pred_check_branch
      %30 = sbr.rel (0) target = $region17
    $region16: #{forward_impl.1} parent=1 // pred_region
      %32 = vsyncadd [#allocation5], 0
      %s33 = sshll.u32 %s3, 4
      %s34 = int_to_ptr.hbm [resolvable:$true] %s33
      %s35 = sshll.u32 [#allocation4], 4
      %s36 = int_to_ptr.vmem [resolvable:$true] %s35
      %41 = dma.hbm_to_vmem [thread:$0]  %s34, 1024, %s36, [#allocation5], 64, 64, 4
    $region17: #{forward_impl.1} parent=1 // pred_fallthru
      _
    // Predicated region
    $region18: #{forward_impl.1} parent=1 // pred_check
      _
    $region19: #{forward_impl.1} parent=1 // pred_check_branch
      %43 = sbr.rel (0) target = $region21
    $region20: #{forward_impl.1} parent=1 // pred_region
      _
    $region21: #{forward_impl.1} parent=1 // pred_fallthru
      _
    // Predicated region
    $region22: #{forward_impl.1} parent=1 // pred_check
      _
    $region23: #{forward_impl.1} parent=1 // pred_check_branch
      %45 = sbr.rel (0) target = $region25
    $region24: #{forward_impl.1} parent=1 // pred_region
      %47 = dma.done [#allocation3], 1024
    $region25: #{forward_impl.1} parent=1 // pred_fallthru
      _
    // Predicated region
    $region26: #{forward_impl.1} parent=1 // pred_check
      _
    $region27: #{forward_impl.1} parent=1 // pred_check_branch
      %49 = sbr.rel (0) target = $region29
    $region28: #{forward_impl.1} parent=1 // pred_region
      %51 = dma.done [#allocation5], 1024
    $region29: #{forward_impl.1} parent=1 // pred_fallthru
      _
    %v52 = vld [vmem:[%s0] sm:$0xf]
    %v53 = vld [vmem:[%s0 + $0x4] sm:$0xf]
    %v54 = vld [vmem:[#allocation2] sm:$0xf]
    %v55 = vld [vmem:[#allocation2 + $0x4] sm:$0xf]
    %v56 = vld [vmem:[#allocation2 + $0x8] sm:$0xf]
    %v57 = vld [vmem:[#allocation2 + $0xc] sm:$0xf]
    %v58 = vld [vmem:[#allocation2 + $0x10] sm:$0xf]
    %v59 = vld [vmem:[#allocation2 + $0x14] sm:$0xf]
    %v60 = vld [vmem:[#allocation2 + $0x18] sm:$0xf]
    %v61 = vld [vmem:[#allocation2 + $0x1c] sm:$0xf]
    %v62 = vld [vmem:[#allocation2 + $0x20] sm:$0xf]
    %v63 = vld [vmem:[#allocation2 + $0x24] sm:$0xf]
    %v64 = vld [vmem:[#allocation2 + $0x28] sm:$0xf]
    %v65 = vld [vmem:[#allocation2 + $0x2c] sm:$0xf]
    %v66 = vld [vmem:[#allocation2 + $0x30] sm:$0xf]
    %v67 = vld [vmem:[#allocation2 + $0x34] sm:$0xf]
    %v68 = vld [vmem:[#allocation2 + $0x38] sm:$0xf]
    %v69 = vld [vmem:[#allocation2 + $0x3c] sm:$0xf]
    %v70 = vld [vmem:[%s2] sm:$0x1]
    %v72 = vperm.slane %v70, 0
    %v76 = vunpack.c.l.b16 %v52
    %v77 = vunpack.c.l.b16 %v53
    %v78 = vpack.c.b16 %v77, %v76
    %v96 = vunpack.c.l.b16 %v54
    %v97 = vunpack.c.l.b16 %v55
    %v98 = vunpack.c.l.b16 %v56
    %v99 = vunpack.c.l.b16 %v57
    %v100 = vunpack.c.l.b16 %v58
    %v101 = vunpack.c.l.b16 %v59
    %v102 = vunpack.c.l.b16 %v60
    %v103 = vunpack.c.l.b16 %v61
    %v104 = vunpack.c.l.b16 %v62
    %v105 = vunpack.c.l.b16 %v63
    %v106 = vunpack.c.l.b16 %v64
    %v107 = vunpack.c.l.b16 %v65
    %v108 = vunpack.c.l.b16 %v66
    %v109 = vunpack.c.l.b16 %v67
    %v110 = vunpack.c.l.b16 %v68
    %v111 = vunpack.c.l.b16 %v69
    %v112 = vpack.c.b16 %v97, %v96
    %v113 = vpack.c.b16 %v99, %v98
    %v114 = vpack.c.b16 %v101, %v100
    %v115 = vpack.c.b16 %v103, %v102
    %v116 = vpack.c.b16 %v105, %v104
    %v117 = vpack.c.b16 %v107, %v106
    %v118 = vpack.c.b16 %v109, %v108
    %v119 = vpack.c.b16 %v111, %v110
    %128 = vmatpush.bf16.msra.mxu0 %v119
    %129 = vmatpush.bf16.msra.mxu0 %v118
    %130 = vmatpush.bf16.msra.mxu0 %v117
    %131 = vmatpush.bf16.msra.mxu0 %v116
    %132 = vmatpush.bf16.msra.mxu0 %v115
    %133 = vmatpush.bf16.msra.mxu0 %v114
    %134 = vmatpush.bf16.msra.mxu0 %v113
    %135 = vmatpush.bf16.msra.mxu0 %v112
    %136 = vmatmul.bf16.gmra.mxu0 %v78
    %v137 = vpop.f32.mrf.mxu0
    %v138 = vadd.f32 %v72, %v137
    %v139 = vpop.f32.mrf.mxu0
    %v140 = vadd.f32 %v72, %v139
    %141 = vdwg.mxu0
    %v142 = vmax.f32 %v138, 0.0
    %v143 = vmax.f32 %v140, 0.0
    %v144 = vpack.c.bf16 %v143, %v142
    %v145 = vld [vmem:[#allocation4] sm:$0xf]
    %v146 = vld [vmem:[#allocation4 + $0x4] sm:$0xf]
    %v147 = vld [vmem:[#allocation4 + $0x8] sm:$0xf]
    %v148 = vld [vmem:[#allocation4 + $0xc] sm:$0xf]
    %v149 = vld [vmem:[#allocation4 + $0x10] sm:$0xf]
    %v150 = vld [vmem:[#allocation4 + $0x14] sm:$0xf]
    %v151 = vld [vmem:[#allocation4 + $0x18] sm:$0xf]
    %v152 = vld [vmem:[#allocation4 + $0x1c] sm:$0xf]
    %v153 = vld [vmem:[#allocation4 + $0x20] sm:$0xf]
    %v154 = vld [vmem:[#allocation4 + $0x24] sm:$0xf]
    %v155 = vld [vmem:[#allocation4 + $0x28] sm:$0xf]
    %v156 = vld [vmem:[#allocation4 + $0x2c] sm:$0xf]
    %v157 = vld [vmem:[#allocation4 + $0x30] sm:$0xf]
    %v158 = vld [vmem:[#allocation4 + $0x34] sm:$0xf]
    %v159 = vld [vmem:[#allocation4 + $0x38] sm:$0xf]
    %v160 = vld [vmem:[#allocation4 + $0x3c] sm:$0xf]
    %v161 = vld [vmem:[%s4] sm:$0x1]
    %v163 = vperm.slane %v161, 0
    %v181 = vunpack.c.l.b16 %v145
    %v182 = vunpack.c.l.b16 %v146
    %v183 = vunpack.c.l.b16 %v147
    %v184 = vunpack.c.l.b16 %v148
    %v185 = vunpack.c.l.b16 %v149
    %v186 = vunpack.c.l.b16 %v150
    %v187 = vunpack.c.l.b16 %v151
    %v188 = vunpack.c.l.b16 %v152
    %v189 = vunpack.c.l.b16 %v153
    %v190 = vunpack.c.l.b16 %v154
    %v191 = vunpack.c.l.b16 %v155
    %v192 = vunpack.c.l.b16 %v156
    %v193 = vunpack.c.l.b16 %v157
    %v194 = vunpack.c.l.b16 %v158
    %v195 = vunpack.c.l.b16 %v159
    %v196 = vunpack.c.l.b16 %v160
    %v197 = vpack.c.b16 %v182, %v181
    %v198 = vpack.c.b16 %v184, %v183
    %v199 = vpack.c.b16 %v186, %v185
    %v200 = vpack.c.b16 %v188, %v187
    %v201 = vpack.c.b16 %v190, %v189
    %v202 = vpack.c.b16 %v192, %v191
    %v203 = vpack.c.b16 %v194, %v193
    %v204 = vpack.c.b16 %v196, %v195
    %213 = vmatpush.bf16.msra.mxu0 %v204
    %214 = vmatpush.bf16.msra.mxu0 %v203
    %215 = vmatpush.bf16.msra.mxu0 %v202
    %216 = vmatpush.bf16.msra.mxu0 %v201
    %217 = vmatpush.bf16.msra.mxu0 %v200
    %218 = vmatpush.bf16.msra.mxu0 %v199
    %219 = vmatpush.bf16.msra.mxu0 %v198
    %220 = vmatpush.bf16.msra.mxu0 %v197
    %221 = vmatmul.bf16.gmra.mxu0 %v144
    %v222 = vpop.f32.mrf.mxu0
    %v223 = vadd.f32 %v163, %v222
    %v224 = vpop.f32.mrf.mxu0
    %v225 = vadd.f32 %v163, %v224
    %226 = vdwg.mxu0
    %v227 = vlaneseq
    %v228 = vand.u32 %v227, 127
    %vm229 = vcmp.lt.s32.totalorder %v228, 8
    %v230 = vsel %vm229, %v223, -inf
    %v231 = vsel %vm229, %v225, -inf
    %232 = vmax.xlane.f32.xlu0 %v230
    %v233 = vpop.xlane.xlu0 %232
    %234 = vmax.xlane.f32.xlu0 %v231
    %v235 = vpop.xlane.xlu0 %234
    %v236 = vsub.f32 %v230, %v233
    %v237 = vsub.f32 %v231, %v235
    %v238 = vmul.f32 %v236, 1.442695
    %v239 = vpow.pop %v238
    %v240 = vmul.f32 %v237, 1.442695
    %v241 = vpow.pop %v240
    %242 = vadd.xlane.f32.xlu0 %v239
    %v243 = vpop.xlane.xlu0 %242
    %244 = vadd.xlane.f32.xlu0 %v241
    %v245 = vpop.xlane.xlu0 %244
    %v246 = vlog2.pop %v243
    %v247 = vmul.f32 %v246, 0.6931472
    %v248 = vlog2.pop %v245
    %v249 = vmul.f32 %v248, 0.6931472
    %v250 = vsub.f32 %v236, %v247
    %v251 = vsub.f32 %v237, %v249
    %v252 = vsel %vm229, %v250, 0.0
    %v253 = vsel %vm229, %v251, 0.0
    %254 = vst [vmem:[%s5] sm:$0xff] %v252
    %255 = vst [vmem:[%s5 + $0x8] sm:$0xff] %v253
    // Predicated region
    $region30: #{forward_impl.1} parent=1 // pred_check
      _
    $region31: #{forward_impl.1} parent=1 // pred_check_branch
      %257 = sbr.rel (0) target = $region33
    $region32: #{forward_impl.1} parent=1 // pred_region
      _
    $region33: #{forward_impl.1} parent=1 // pred_fallthru
      _
    // Predicated region
    $region34: #{forward_impl.1} parent=1 // pred_check
      _
    $region35: #{forward_impl.1} parent=1 // pred_check_branch
      %259 = sbr.rel (0) target = $region37
    $region36: #{forward_impl.1} parent=1 // pred_region
      _
    $region37: #{forward_impl.1} parent=1 // pred_fallthru
      _
    %260 = vsyncpa [#allocation3], 1
    %261 = vsyncpa [#allocation5], 1

</llo_original>
